<compile_context>
chip_gen: v7x
topology: tpu7x:2x2x1
jax: 0.10.0
libtpu: 0.0.40
codegen_flags: <defaults>
</compile_context>

<pallas_src>
import math
import functools

import jax
import jax.numpy as jnp
from jax.experimental import pallas as pl
from jax.experimental.pallas import tpu as pltpu

DROPOUT_CONSTANT = 0.1


def _build_positional_encodings(max_sequence_length: int, dimensions: int) -> jnp.ndarray:
    """Precompute the PE table exactly as in the PyTorch __init__ (glue, not hot path)."""
    pos = jnp.arange(0, max_sequence_length, dtype=jnp.float32)[:, None]            # (S_max, 1)
    denominator = jnp.exp(
        jnp.arange(0, dimensions, 2, dtype=jnp.float32)
        * -(math.log(10000.0) / dimensions)
    )                                                                                # (D/2,)
    pe = jnp.zeros((max_sequence_length, dimensions), dtype=jnp.float32)
    pe = pe.at[:, 0::2].set(jnp.sin(pos / denominator))
    pe = pe.at[:, 1::2].set(jnp.cos(pos / denominator))
    return pe[None, :, :]                                                            # (1, S_max, D)


def _hash_u32(x):
    # murmur3 fmix32-style avalanche.  Pure 32-bit integer VPU ops, so it lowers
    # both on real TPU and in interpret/CPU-fallback mode (unlike pltpu.prng_*,
    # which caused the previous 'prng_seed not found for platform cpu' failure).
    x = x ^ (x >> 16)
    x = x * jnp.uint32(0x7FEB352D)
    x = x ^ (x >> 15)
    x = x * jnp.uint32(0x846CA68B)
    x = x ^ (x >> 16)
    return x


def _pe_dropout_kernel(seed_ref, x_ref, pe_ref, o_ref, *,
                       dropout_p: float, training: bool,
                       rows_per_batch: int, cols: int, tile_rows: int):
    # hot path: elementwise add of positional encodings + (inverted) dropout.
    y = x_ref[...] + pe_ref[...]                         # (TR, C) + (TR, C)

    if training and dropout_p > 0.0:
        # Stateless counter-based PRNG: hash of (seed, global element index).
        # Mixes BOTH grid axes (row-tile and batch) via the global index, so no
        # tile ever replays another tile's random stream; safe under megacore
        # sharding ("parallel" axes) since there is no PRNG state.
        r = jax.lax.broadcasted_iota(jnp.int32, y.shape, 0).astype(jnp.uint32)
        c = jax.lax.broadcasted_iota(jnp.int32, y.shape, 1).astype(jnp.uint32)
        row0 = pl.program_id(0).astype(jnp.uint32) * jnp.uint32(tile_rows)
        b = pl.program_id(1).astype(jnp.uint32)
        idx = (b * jnp.uint32(rows_per_batch) + row0 + r) * jnp.uint32(cols) + c

        seed = seed_ref[0].astype(jnp.uint32)
        salt = _hash_u32(seed ^ jnp.uint32(0x9E3779B9))
        bits = _hash_u32(idx ^ salt)

        # Integer threshold compare: all 32 random bits, no int->float convert.
        thresh = jnp.uint32(min(int(dropout_p * 4294967296.0), 4294967295))
        keep = bits >= thresh
        scale = jnp.float32(1.0 / (1.0 - dropout_p))
        y = jnp.where(keep, y * scale, jnp.zeros_like(y))

    o_ref[...] = y


def _pick_tile_rows(rows: int, cols: int, max_block_bytes: int = 2 * 1024 * 1024) -> int:
    """Largest row tile that divides `rows`, keeps one f32 block <= ~2 MiB
    (so 3 arrays x double-buffering stays under the 16 MiB v5e scoped default),
    and satisfies the (8,128) sublane rule (multiple of 8 or the full dim)."""
    max_rows = max(1, max_block_bytes // (cols * 4))
    if rows <= max_rows:
        return rows
    for t in (4096, 2048, 1024, 512, 256, 128, 64, 32, 16, 8):
        if t <= max_rows and rows % t == 0:
            return t
    return rows  # no clean divisor; fall back to the whole slab (still correct)


def positional_encoder_forward(x, pe_table, seed, *,
                               dropout_p: float = DROPOUT_CONSTANT,
                               training: bool = True):
    """x: (B, S, D) float32; pe_table: (1, S_max, D) float32; seed: int32 (1,)."""
    B, S, D = x.shape
    pe_s = pe_table[0, :S, :]                            # (S, D), glue slice

    # Lane-dense re-layout of the per-batch (S, D) slab: make the last dim a
    # multiple of 128 so output stores are unmasked vst (biggest measured lever
    # for narrow D).  Row-major flattening is identical for x[b] and pe, so the
    # broadcasted add is unchanged.
    flat = S * D
    if D % 128 == 0:
        R, C = S, D
    else:
        C = 0
        for cand in (512, 256, 128):
            if flat % cand == 0:
                C = cand
                break
        if C:
            R = flat // C
        else:
            R, C = S, D                                   # fallback: lane-sparse but correct

    x2 = x.reshape(B, R, C)
    pe2 = pe_s.reshape(R, C)

    TR = _pick_tile_rows(R, C)
    grid = (R // TR, B)                                   # row-tile outer, batch inner:
                                                          # PE block index constant across
                                                          # the inner axis -> fetched once
                                                          # per row tile, not per batch.

    kernel = functools.partial(
        _pe_dropout_kernel,
        dropout_p=float(dropout_p), training=bool(training),
        rows_per_batch=R, cols=C, tile_rows=TR)

    out2 = pl.pallas_call(
        kernel,
        out_shape=jax.ShapeDtypeStruct((B, R, C), x.dtype),
        grid_spec=pltpu.PrefetchScalarGridSpec(
            num_scalar_prefetch=1,                        # seed lands in SMEM
            grid=grid,
            in_specs=[
                pl.BlockSpec((None, TR, C), lambda s, b, sref: (b, s, 0)),  # x tile
                pl.BlockSpec((TR, C), lambda s, b, sref: (s, 0)),           # shared PE tile
            ],
            out_specs=pl.BlockSpec((None, TR, C), lambda s, b, sref: (b, s, 0)),
        ),
        compiler_params=pltpu.CompilerParams(
            # both axes independent (stateless PRNG) -> shard across the 2 TCs on v7x;
            # neutral on v5e/v6e.
            dimension_semantics=("parallel", "parallel")),
    )(seed, x2, pe2)

    return out2.reshape(B, S, D)


if __name__ == "__main__":
    # small shapes consistent with the module: batch=2, seq=8, dim=32, max_seq=16
    B, S, D = 2, 8, 32
    MAX_SEQ = 16

    key = jax.random.PRNGKey(0)
    x = jax.random.normal(key, (B, S, D), dtype=jnp.float32)
    pe_table = _build_positional_encodings(MAX_SEQ, D)
    seed = jnp.array([0], dtype=jnp.int32)

    # training path (add + inverted dropout via in-kernel hash PRNG)
    out_train = jax.block_until_ready(
        positional_encoder_forward(x, pe_table, seed, training=True))

    # eval path (dropout is identity) — verify add against plain-JAX reference
    out_eval = jax.block_until_ready(
        positional_encoder_forward(x, pe_table, seed, training=False))
    ref = x + pe_table[:, :S, :]
    assert out_eval.shape == (B, S, D)
    assert jnp.allclose(out_eval, ref, atol=1e-6), "eval-mode mismatch vs reference"

    # sanity on the dropout path: surviving elements are ref / (1 - p), dropped are 0
    kept = out_train != 0
    assert jnp.allclose(jnp.where(kept, out_train, 0.0),
                        jnp.where(kept, ref / (1.0 - DROPOUT_CONSTANT), 0.0),
                        atol=1e-5), "train-mode dropout scaling mismatch"

    # TODO(synk): torch.nn.Dropout's RNG stream cannot be bit-reproduced; dropout here
    # uses a deterministic counter-based hash PRNG with identical inverted-dropout math.
    print("KERNEL_OK")
</pallas_src>

<mosaic_0001>
module attributes {stable_mosaic.version = 11 : i64} {
  func.func @_pe_dropout_kernel(%arg0: i32, %arg1: i32, %arg2: memref<1xi32, #tpu.memory_space<smem>>, %arg3: memref<1x1x256xf32, #tpu.memory_space<vmem>>, %arg4: memref<1x256xf32, #tpu.memory_space<vmem>>, %arg5: memref<1x1x256xf32, #tpu.memory_space<vmem>>) attributes {dimension_semantics = [#tpu.dimension_semantics<parallel>, #tpu.dimension_semantics<parallel>], iteration_bounds = array<i64: 1, 2>, scalar_prefetch = 1 : i64, scratch_operands = 0 : i64, tpu.core_type = #tpu.core_type<tc>, window_params = [{transform_indices = @transform_0, window_bounds = array<i64: 1, 1, 256>}, {transform_indices = @transform_1, window_bounds = array<i64: 1, 256>}, {transform_indices = @transform_2, window_bounds = array<i64: 1, 1, 256>}]} {
    %c0 = arith.constant 0 : index
    %c0_0 = arith.constant 0 : index
    %c0_1 = arith.constant 0 : index
    %0 = vector.load %arg3[%c0, %c0_0, %c0_1] : memref<1x1x256xf32, #tpu.memory_space<vmem>>, vector<1x1x256xf32>
    %1 = vector.shape_cast %0 : vector<1x1x256xf32> to vector<1x256xf32>
    %c0_2 = arith.constant 0 : index
    %c0_3 = arith.constant 0 : index
    %2 = vector.load %arg4[%c0_2, %c0_3] : memref<1x256xf32, #tpu.memory_space<vmem>>, vector<1x256xf32>
    %3 = arith.addf %1, %2 : vector<1x256xf32>
    %4 = tpu.iota {dimensions = array<i32: 0>} : vector<1x256xi32>
    %5 = tpu.iota {dimensions = array<i32: 1>} : vector<1x256xi32>
    %c1_i32 = arith.constant 1 : i32
    %6 = arith.muli %arg0, %c1_i32 : i32
    %c1_i32_4 = arith.constant 1 : i32
    %7 = arith.muli %arg1, %c1_i32_4 : i32
    %8 = arith.addi %7, %6 : i32
    %9 = vector.broadcast %8 : i32 to vector<1x256xi32>
    %10 = arith.addi %9, %4 : vector<1x256xi32>
    %c256_i32 = arith.constant 256 : i32
    %11 = vector.broadcast %c256_i32 : i32 to vector<1x256xi32>
    %12 = arith.muli %10, %11 : vector<1x256xi32>
    %13 = arith.addi %12, %5 : vector<1x256xi32>
    %c0_5 = arith.constant 0 : index
    %14 = memref.load %arg2[%c0_5] : memref<1xi32, #tpu.memory_space<smem>>
    %c-1640531527_i32 = arith.constant -1640531527 : i32
    %15 = arith.xori %14, %c-1640531527_i32 : i32
    %c16_i32 = arith.constant 16 : i32
    %16 = arith.shrui %15, %c16_i32 : i32
    %17 = arith.xori %15, %16 : i32
    %c2146121005_i32 = arith.constant 2146121005 : i32
    %18 = arith.muli %17, %c2146121005_i32 : i32
    %c15_i32 = arith.constant 15 : i32
    %19 = arith.shrui %18, %c15_i32 : i32
    %20 = arith.xori %18, %19 : i32
    %c-2073254261_i32 = arith.constant -2073254261 : i32
    %21 = arith.muli %20, %c-2073254261_i32 : i32
    %c16_i32_6 = arith.constant 16 : i32
    %22 = arith.shrui %21, %c16_i32_6 : i32
    %23 = arith.xori %21, %22 : i32
    %24 = vector.broadcast %23 : i32 to vector<1x256xi32>
    %25 = arith.xori %13, %24 : vector<1x256xi32>
    %c16_i32_7 = arith.constant 16 : i32
    %26 = vector.broadcast %c16_i32_7 : i32 to vector<1x256xi32>
    %27 = arith.shrui %25, %26 : vector<1x256xi32>
    %28 = arith.xori %25, %27 : vector<1x256xi32>
    %c2146121005_i32_8 = arith.constant 2146121005 : i32
    %29 = vector.broadcast %c2146121005_i32_8 : i32 to vector<1x256xi32>
    %30 = arith.muli %28, %29 : vector<1x256xi32>
    %c15_i32_9 = arith.constant 15 : i32
    %31 = vector.broadcast %c15_i32_9 : i32 to vector<1x256xi32>
    %32 = arith.shrui %30, %31 : vector<1x256xi32>
    %33 = arith.xori %30, %32 : vector<1x256xi32>
    %c-2073254261_i32_10 = arith.constant -2073254261 : i32
    %34 = vector.broadcast %c-2073254261_i32_10 : i32 to vector<1x256xi32>
    %35 = arith.muli %33, %34 : vector<1x256xi32>
    %c16_i32_11 = arith.constant 16 : i32
    %36 = vector.broadcast %c16_i32_11 : i32 to vector<1x256xi32>
    %37 = arith.shrui %35, %36 : vector<1x256xi32>
    %38 = arith.xori %35, %37 : vector<1x256xi32>
    %c429496729_i32 = arith.constant 429496729 : i32
    %39 = vector.broadcast %c429496729_i32 : i32 to vector<1x256xi32>
    %40 = arith.cmpi uge, %38, %39 : vector<1x256xi32>
    %cst = arith.constant 1.11111116 : f32
    %41 = vector.broadcast %cst : f32 to vector<1x256xf32>
    %42 = arith.mulf %3, %41 : vector<1x256xf32>
    %cst_12 = arith.constant 0.000000e+00 : f32
    %43 = vector.broadcast %cst_12 : f32 to vector<1x256xf32>
    %44 = arith.select %40, %42, %43 : vector<1x256xi1>, vector<1x256xf32>
    %c0_13 = arith.constant 0 : index
    %c0_14 = arith.constant 0 : index
    %c0_15 = arith.constant 0 : index
    %45 = vector.load %arg5[%c0_13, %c0_14, %c0_15] : memref<1x1x256xf32, #tpu.memory_space<vmem>>, vector<1x1x256xf32>
    %46 = vector.shape_cast %45 : vector<1x1x256xf32> to vector<1x256xf32>
    %47 = vector.shape_cast %44 : vector<1x256xf32> to vector<1x1x256xf32>
    tpu.vector_store %arg5[%c0_13, %c0_14, %c0_15], %47 {strides = array<i32>} : memref<1x1x256xf32, #tpu.memory_space<vmem>>, vector<1x1x256xf32>,
    return
  }
  func.func @transform_0(%arg0: i32, %arg1: i32, %arg2: memref<1xi32, #tpu.memory_space<smem>>) -> (i32, i32, i32) {
    %c0_i32 = arith.constant 0 : i32
    %c0_i32_0 = arith.constant 0 : i32
    return %arg1, %arg0, %c0_i32 : i32, i32, i32
  }
  func.func @transform_1(%arg0: i32, %arg1: i32, %arg2: memref<1xi32, #tpu.memory_space<smem>>) -> (i32, i32) {
    %c0_i32 = arith.constant 0 : i32
    %c0_i32_0 = arith.constant 0 : i32
    return %arg0, %c0_i32 : i32, i32
  }
  func.func @transform_2(%arg0: i32, %arg1: i32, %arg2: memref<1xi32, #tpu.memory_space<smem>>) -> (i32, i32, i32) {
    %c0_i32 = arith.constant 0 : i32
    %c0_i32_0 = arith.constant 0 : i32
    return %arg1, %arg0, %c0_i32 : i32, i32, i32
  }
}

</mosaic_0001>

<llo_original>
// kernel: tpu_custom_call.1
$region0: #{tpu_custom_call.1}
  #allocation0 [shape = 'u32[]', space=smem, size = 0x4, offset = 0x4, fixed_abs, tag = 'smem constant byte address 0x4 - core index']
  #allocation1 [shape = 'u32[144,128]{1,0:T(1,128)}', space=vmem, size = 0x12000, scoped, tag = 'internal scratch']
  #allocation2 [shape = 's32[1]{0}', space=sflag, size = 0x4, scoped, tag = 'scoped memory for tpu_custom_call.1']
  #allocation3 [shape = 's32[1]{0:T(128)S(6)}', space=smem, size = 0x200, scoped, tag = 'prefetched SMEM operand 0']
  %s0 = inlined_call_operand.<no memory space> [shape: s32[1], index: 0, kind: input, shape index: {}]
  %s1 = inlined_call_operand.hbm [shape: f32[2,1,256], index: 1, kind: input, shape index: {}]
  %s2 = inlined_call_operand.vmem [shape: f32[1,256], index: 2, kind: input, shape index: {}]
  %s3 = inlined_call_operand.hbm [shape: f32[2,1,256], index: 3, kind: output, shape index: {}]
  %s4 = sld [smem:[#allocation0]]
  $region45: #{tpu_custom_call.1} parent=0
    _
  %s6 = ssub.s32 1, %s4
  %s7 = scalar_select 0, %s6, %s4
  %8 = sst [smem:[#allocation3]] %s0
  $region1: #{tpu_custom_call.1} parent=0
    #allocation4 [shape = 'u8[2048]{0}', space=vmem, size = 0x800, scoped, tag = 'input window, operand 1']
    #allocation5 [shape = 's32[2]{0}', space=sflag, size = 0x8, scoped, tag = 'scoped memory for tpu_custom_call.1']
    #allocation6 [shape = 's32[2]{0}', space=sflag, size = 0x8, scoped, tag = 'scoped memory for tpu_custom_call.1']
    #allocation7 [shape = 'u8[2048]{0}', space=vmem, size = 0x800, scoped, tag = 'output window, operand 0']
    %9 = vsyncpa [#allocation5], 0
    %s10 = scalar_lea.sflag [#allocation5], 1
    %11 = vsyncpa %s10, 0
    %12 = vsyncpa [#allocation6], 0
    %s13 = scalar_lea.sflag [#allocation6], 1
    %14 = vsyncpa %s13, 0
    loop: start=0, step=1, limit=4
    $region2: #{tpu_custom_call.1} parent=1 // loop_pre_header
      _
    $region3: #{tpu_custom_call.1} parent=1 // loop_header
      %s16 = sphi 0, %s20
      %p17 = scmp.ge.s32.totalorder %s16, 4
      %s23 = sphi 0, %s35
      %s24 = sphi 0, %s31
      %s25 = sphi 0, %s23
      %s26 = sphi 0, %s24
      %s27 = sphi 0, %s25
      %s28 = sphi 0, %s26
      %s40 = sphi 0, %s42
      %s43 = sphi 0, %s40
      %s44 = sphi 0, %s43
      %s60 = sphi 0, %s44
      %s66 = sphi 0, %s68
      %s69 = sphi 0, %s66
      %s70 = sphi 0, %s69
      %s86 = sphi 0, %s70
      %s94 = sphi 0, %s96
      %s97 = sphi 0, %s94
      %s98 = sphi 0, %s97
      %s114 = sphi 0, %s98
    $region4: #{tpu_custom_call.1} parent=1 // loop_header_branch
      %19 = sbr.rel (%p17) target = $region8
    $region5: #{tpu_custom_call.1} parent=1 // loop_body
      %s21 = ssub.s32 %s16, 1
      %s22 = ssub.s32 %s16, 2
      %s29 = sadd.s32 1, %s24
      %p30 = scmp.ge.s32.totalorder %s29, 2
      %s31 = scalar_select %p30, 0, %s29
      %s32 = sadd.s32 1, %s23
      %s33 = scalar_select %p30, %s32, %s23
      %p34 = scmp.ge.s32.totalorder %s33, 1
      %s35 = scalar_select %p34, 0, %s33
      %s36 = ssub.s32 %s24, %s31
      %s37 = ssub.s32 %s23, %s35
      %s38 = sor.u32 %s36, %s37
      %p39 = scmp.eq.s32.totalorder %s38, 0
      %s41 = sadd.s32 %s40, 1
      %s42 = scalar_select %p39, %s40, %s41
      %p45 = pneg %p39
      %p46 = scmp.eq.s32.totalorder %s16, 1
      %p47 = por %p45, %p46
      %p48 = scmp.ne.s32.totalorder %s40, %s43
      %p49 = scmp.eq.s32.totalorder %s16, 0
      %p50 = por %p48, %p49
      %p51 = scmp.ne.s32.totalorder %s40, %s43
      %p52 = scmp.eq.s32.totalorder %s21, 1
      %p53 = por %p51, %p52
      %p54 = scmp.ne.s32.totalorder %s43, %s44
      %p55 = scmp.eq.s32.totalorder %s21, 0
      %p56 = por %p54, %p55
      %p57 = scmp.ne.s32.totalorder %s43, %s44
      %p58 = scmp.eq.s32.totalorder %s22, 1
      %p59 = por %p57, %p58
      %p61 = scmp.ne.s32.totalorder %s44, %s60
      %p62 = scmp.eq.s32.totalorder %s22, 0
      %p63 = por %p61, %p62
      %s64 = ssub.s32 %s23, %s35
      %p65 = scmp.eq.s32.totalorder %s64, 0
      %s67 = sadd.s32 %s66, 1
      %s68 = scalar_select %p65, %s66, %s67
      %p71 = pneg %p65
      %p72 = scmp.eq.s32.totalorder %s16, 1
      %p73 = por %p71, %p72
      %p74 = scmp.ne.s32.totalorder %s66, %s69
      %p75 = scmp.eq.s32.totalorder %s16, 0
      %p76 = por %p74, %p75
      %p77 = scmp.ne.s32.totalorder %s66, %s69
      %p78 = scmp.eq.s32.totalorder %s21, 1
      %p79 = por %p77, %p78
      %p80 = scmp.ne.s32.totalorder %s69, %s70
      %p81 = scmp.eq.s32.totalorder %s21, 0
      %p82 = por %p80, %p81
      %p83 = scmp.ne.s32.totalorder %s69, %s70
      %p84 = scmp.eq.s32.totalorder %s22, 1
      %p85 = por %p83, %p84
      %p87 = scmp.ne.s32.totalorder %s70, %s86
      %p88 = scmp.eq.s32.totalorder %s22, 0
      %p89 = por %p87, %p88
      %s90 = ssub.s32 %s24, %s31
      %s91 = ssub.s32 %s23, %s35
      %s92 = sor.u32 %s90, %s91
      %p93 = scmp.eq.s32.totalorder %s92, 0
      %s95 = sadd.s32 %s94, 1
      %s96 = scalar_select %p93, %s94, %s95
      %p99 = pneg %p93
      %p100 = scmp.eq.s32.totalorder %s16, 1
      %p101 = por %p99, %p100
      %p102 = scmp.ne.s32.totalorder %s94, %s97
      %p103 = scmp.eq.s32.totalorder %s16, 0
      %p104 = por %p102, %p103
      %p105 = scmp.ne.s32.totalorder %s94, %s97
      %p106 = scmp.eq.s32.totalorder %s21, 1
      %p107 = por %p105, %p106
      %p108 = scmp.ne.s32.totalorder %s97, %s98
      %p109 = scmp.eq.s32.totalorder %s21, 0
      %p110 = por %p108, %p109
      %p111 = scmp.ne.s32.totalorder %s97, %s98
      %p112 = scmp.eq.s32.totalorder %s22, 1
      %p113 = por %p111, %p112
      %p115 = scmp.ne.s32.totalorder %s98, %s114
      %p116 = scmp.eq.s32.totalorder %s22, 0
      %p117 = por %p115, %p116
      %p118 = scmp.le.s32.totalorder 1, %s16
      %p119 = scmp.lt.s32.totalorder %s16, 3
      %p120 = pnand %p118, %p119
      %p121 = pneg %p120
      // Predicated region
      $region9: #{tpu_custom_call.1} parent=5 // pred_check
        _
      $region10: #{tpu_custom_call.1} parent=5 // pred_check_branch
        %123 = sbr.rel (%p120) target = $region12
      $region11: #{tpu_custom_call.1} parent=5 // pred_region
        %s124 = ssub.s32 %s16, 1
        // Predicated region
        $region13: #{tpu_custom_call.1} parent=11 // pred_check
          %p125 = pneg %p82
        $region14: #{tpu_custom_call.1} parent=11 // pred_check_branch
          %127 = sbr.rel (%p125) target = $region16
        $region15: #{tpu_custom_call.1} parent=11 // pred_region
          %p128 = scmp.lt.s32.totalorder %s25, 0
          %s129 = scalar_select %p128, %s25, 0
          %s130 = smul.addr %s129, 2
          %s131 = scalar_lea.vmem %s2, %s130
        $region16: #{tpu_custom_call.1} parent=11 // pred_fallthru
          _
      $region12: #{tpu_custom_call.1} parent=5 // pred_fallthru
        _
      %p132 = scmp.lt.s32.totalorder %s16, 2
      // Predicated region
      $region17: #{tpu_custom_call.1} parent=5 // pred_check
        %p133 = pneg %p132
      $region18: #{tpu_custom_call.1} parent=5 // pred_check_branch
        %135 = sbr.rel (%p133) target = $region20
      $region19: #{tpu_custom_call.1} parent=5 // pred_region
        // Predicated region
        $region21: #{tpu_custom_call.1} parent=19 // pred_check
          %p136 = pneg %p50
        $region22: #{tpu_custom_call.1} parent=19 // pred_check_branch
          %138 = sbr.rel (%p136) target = $region24
        $region23: #{tpu_custom_call.1} parent=19 // pred_region
          %s139 = sand.u32 %s40, 1
          %s140 = scalar_lea.sflag [#allocation5], %s139
          %s141 = sand.u32 %s40, 1
          %s142 = smul.addr %s141, 2
          %s143 = scalar_lea.vmem [#allocation4], %s142
          %s145 = ssub.s32 32, 32
          %146 = vsyncadd %s140, %s145
          %s147 = smul.addr %s23, 2
          %s148 = smul.addr %s24, 2
          %s149 = sadd.s32 %s147, %s148
          %s150 = smul.addr %s149, 16
          %s151 = scalar_lea.hbm %s1, %s150
          %s153 = sshll.u32 %s143, 4
          %s154 = int_to_ptr.vmem [resolvable:$true] %s153
          %156 = dma.hbm_to_vmem [thread:$0]  %s151, 32, %s154, %s140
        $region24: #{tpu_custom_call.1} parent=19 // pred_fallthru
          _
      $region20: #{tpu_custom_call.1} parent=5 // pred_fallthru
        _
      %p157 = scmp.le.s32.totalorder 1, %s16
      %p158 = scmp.lt.s32.totalorder %s16, 3
      %p159 = pnand %p157, %p158
      %p160 = pneg %p159
      // Predicated region
      $region25: #{tpu_custom_call.1} parent=5 // pred_check
        _
      $region26: #{tpu_custom_call.1} parent=5 // pred_check_branch
        %162 = sbr.rel (%p159) target = $region28
      $region27: #{tpu_custom_call.1} parent=5 // pred_region
        %s163 = ssub.s32 %s16, 1
        %s164 = sand.u32 %s43, 1
        %s165 = scalar_lea.sflag [#allocation5], %s164
        %s166 = sand.u32 %s43, 1
        %s167 = smul.addr %s166, 2
        %s168 = scalar_lea.vmem [#allocation4], %s167
        // Predicated region
        $region29: #{tpu_custom_call.1} parent=27 // pred_check
          %p169 = pneg %p56
        $region30: #{tpu_custom_call.1} parent=27 // pred_check_branch
          %171 = sbr.rel (%p169) target = $region32
        $region31: #{tpu_custom_call.1} parent=27 // pred_region
          %172 = dma.done %s165, 32
        $region32: #{tpu_custom_call.1} parent=27 // pred_fallthru
          _
        %s173 = sand.u32 %s43, 1
        %s174 = scalar_lea.sflag [#allocation5], %s173
        %s175 = sand.u32 %s43, 1
        %s176 = smul.addr %s175, 2
        %s177 = scalar_lea.vmem [#allocation4], %s176
        %p178 = pneg %p56
        %p179 = pneg %p53
        %p180 = scmp.lt.s32.totalorder %s25, 0
        %s181 = scalar_select %p180, %s25, 0
        %s182 = smul.addr %s181, 2
        %s183 = scalar_lea.vmem %s2, %s182
        %p184 = pneg %p82
        %p185 = pneg %p79
        %p186 = pneg %p110
        %p187 = pneg %p107
        %s188 = sand.u32 %s97, 1
        %s189 = scalar_lea.sflag [#allocation6], %s188
        %s190 = sand.u32 %s97, 1
        %s191 = smul.addr %s190, 2
        %s192 = scalar_lea.vmem [#allocation7], %s191
        %p193 = scmp.lt.s32.totalorder %s25, 0
        %s194 = scalar_select %p193, %s25, 0
        %s195 = smul.addr %s194, 2
        %s196 = scalar_lea.vmem %s2, %s195
        %v197 = vld [vmem:[%s168] sm:$0x3]
        %v198 = vld [vmem:[%s196] sm:$0x3]
        %v199 = vadd.f32 %v197, %v198
        %v200 = vlaneseq
        %v201 = vshrl.u32 %v200, 7
        %v202 = vlaneseq
        %v203 = vand.u32 %v202, 127
        %v204 = vadd.s32 %v203, 128
        %s205 = sadd.s32 %s26, %s25
        %v206 = vstv %s205
        %v207 = vadd.s32 %v206, %v201
        %v208 = vmul.u32 %v207, 256
        %v209 = vadd.s32 %v208, %v203
        %v210 = vadd.s32 %v208, %v204
        %s211 = sld [smem:[#allocation3]]
        %s212 = sxor.u32 %s211, 2654435769
        %s213 = sshrl.u32 %s212, 16
        %s214 = sxor.u32 %s212, %s213
        %s215 = smul.u32 %s214, 2146121005
        %s216 = sshrl.u32 %s215, 15
        %s217 = sxor.u32 %s215, %s216
        %s218 = smul.u32 %s217, 2221713035
        %s219 = sshrl.u32 %s218, 16
        %s220 = sxor.u32 %s218, %s219
        %v221 = vstv %s220
        %v222 = vxor.u32 %v209, %v221
        %v223 = vxor.u32 %v210, %v221
        %v224 = vshrl.u32 %v222, 16
        %v225 = vshrl.u32 %v223, 16
        %v226 = vxor.u32 %v222, %v224
        %v227 = vxor.u32 %v223, %v225
        %v228 = vmul.u32 %v226, 2146121005
        %v229 = vmul.u32 %v227, 2146121005
        %v230 = vshrl.u32 %v228, 15
        %v231 = vshrl.u32 %v229, 15
        %v232 = vxor.u32 %v228, %v230
        %v233 = vxor.u32 %v229, %v231
        %v234 = vmul.u32 %v232, 2221713035
        %v235 = vmul.u32 %v233, 2221713035
        %v236 = vshrl.u32 %v234, 16
        %v237 = vshrl.u32 %v235, 16
        %v238 = vxor.u32 %v234, %v236
        %v239 = vxor.u32 %v235, %v237
        %vm240 = vcmp.ge.u32.totalorder %v238, 429496729
        %vm241 = vcmp.ge.u32.totalorder %v239, 429496729
        %v242 = vmul.f32 %v199, 1.1111112
        %v244 = vlaneseq
        %v245 = vshrl.u32 %v244, 7
        %v246 = vsub.s32 0, %v245
        %v247 = vrot.slane %v242, %v246
        %v248 = vlaneseq
        %v249 = vshrl.u32 %v248, 7
        %v250 = vsub.s32 1, %v249
        %v251 = vrot.slane %v242, %v250
        %v254 = vsel %vm240, %v247, 0.0
        %v255 = vsel %vm241, %v251, 0.0
        %v258 = vcombine.low %v254, %v255
        %v260 = vunpack.c.l.s4 1966171168
        %v261 = vunpack.c.0.s8 %v260
        %v262 = vlaneseq
        %v263 = vshrl.u32 %v262, 7
        %v264 = vsub.s32 %v261, %v263
        %v265 = vrot.slane %v258, %v264
        %v267 = vunpack.c.l.s4 1966171168
        %v268 = vunpack.c.0.s8 %v267
        %v269 = vlaneseq
        %v270 = vshrl.u32 %v269, 7
        %v271 = vsub.s32 %v268, %v270
        %v272 = vrot.slane %v265, %v271
        %v274 = vlaneseq
        %vm275 = vcmp.ge.s32.totalorder %v274, 0
        %vm276 = vcmp.lt.s32.totalorder %v274, 256
        %vm277 = vmand %vm275, %vm276
        %278 = vst.msk [vmem:[%s192] sm:$0x3] %vm277, %v272
        %s279 = sand.u32 %s97, 1
        %s280 = scalar_lea.sflag [#allocation6], %s279
        %s281 = sand.u32 %s97, 1
        %s282 = smul.addr %s281, 2
        %s283 = scalar_lea.vmem [#allocation7], %s282
        // Predicated region
        $region33: #{tpu_custom_call.1} parent=27 // pred_check
          %p284 = pneg %p107
        $region34: #{tpu_custom_call.1} parent=27 // pred_check_branch
          %286 = sbr.rel (%p284) target = $region36
        $region35: #{tpu_custom_call.1} parent=27 // pred_region
          %s288 = ssub.s32 32, 32
          %289 = vsyncadd %s280, %s288
          %s290 = smul.addr %s25, 2
          %s291 = smul.addr %s26, 2
          %s292 = sadd.s32 %s290, %s291
          %s293 = smul.addr %s292, 16
          %s294 = scalar_lea.hbm %s3, %s293
          %s296 = sshll.u32 %s283, 4
          %s297 = int_to_ptr.vmem [resolvable:$true] %s296
          %299 = dma.vmem_to_hbm [thread:$0]  %s297, 32, %s294, %s280
        $region36: #{tpu_custom_call.1} parent=27 // pred_fallthru
          _
      $region28: #{tpu_custom_call.1} parent=5 // pred_fallthru
        _
      %p300 = scmp.le.s32.totalorder 2, %s16
      // Predicated region
      $region37: #{tpu_custom_call.1} parent=5 // pred_check
        %p301 = pneg %p300
      $region38: #{tpu_custom_call.1} parent=5 // pred_check_branch
        %303 = sbr.rel (%p301) target = $region40
      $region39: #{tpu_custom_call.1} parent=5 // pred_region
        %s304 = ssub.s32 %s16, 2
        // Predicated region
        $region41: #{tpu_custom_call.1} parent=39 // pred_check
          %p305 = pneg %p113
        $region42: #{tpu_custom_call.1} parent=39 // pred_check_branch
          %307 = sbr.rel (%p305) target = $region44
        $region43: #{tpu_custom_call.1} parent=39 // pred_region
          %s308 = sand.u32 %s98, 1
          %s309 = scalar_lea.sflag [#allocation6], %s308
          %s310 = sand.u32 %s98, 1
          %s311 = smul.addr %s310, 2
          %s312 = scalar_lea.vmem [#allocation7], %s311
          %313 = dma.done %s309, 32
        $region44: #{tpu_custom_call.1} parent=39 // pred_fallthru
          _
      $region40: #{tpu_custom_call.1} parent=5 // pred_fallthru
        _
    $region6: #{tpu_custom_call.1} parent=1 // loop_footer
      %s20 = sadd.s32 1, %s16
    $region7: #{tpu_custom_call.1} parent=1 // loop_footer_branch
      %15 = sbr.rel target = $region3
    $region8: #{tpu_custom_call.1} parent=1 // loop_exit
      _
    %314 = vsyncpa [#allocation5], 1
    %s315 = scalar_lea.sflag [#allocation5], 1
    %316 = vsyncpa %s315, 1
    %317 = vsyncpa [#allocation6], 1
    %s318 = scalar_lea.sflag [#allocation6], 1
    %319 = vsyncpa %s318, 1

</llo_original>
